<compile_context>
chip_gen: v6e
topology: v6e:2x2x1
jax: 0.10.0
libtpu: 0.0.40
codegen_flags: <defaults>
</compile_context>

<pallas_src>
import math

import jax
import jax.numpy as jnp
from jax.experimental import pallas as pl
from jax.experimental.pallas import tpu as pltpu


_INV_SQRT2 = 1.0 / math.sqrt(2.0)


def _round_up(a: int, b: int) -> int:
    return -(-a // b) * b


def _gelu_exact_f32(h):
    # torch.nn.GELU() default (exact, erf-based); h is f32.
    return 0.5 * h * (1.0 + jax.lax.erf(h * _INV_SQRT2))


# ----------------------------- kernels -----------------------------

def _mlp_kernel_resident(x_ref, w1_ref, b1_ref, w2_ref, b2_ref, o_ref):
    # x:(tm,C)  w1:(C,H)  b1:(1,H)  w2:(H,C)  b2:(1,C)  o:(tm,C)
    h = jnp.dot(x_ref[...], w1_ref[...], preferred_element_type=jnp.float32)
    h = _gelu_exact_f32(h + b1_ref[...].astype(jnp.float32))
    out = jnp.dot(h.astype(w2_ref.dtype), w2_ref[...],
                  preferred_element_type=jnp.float32)
    o_ref[...] = (out + b2_ref[...].astype(jnp.float32)).astype(o_ref.dtype)


def _mlp_kernel_streamed(x_ref, w1_ref, b1_ref, w2_ref, b2_ref, o_ref, acc_ref):
    # x:(tm,C)  w1 slab:(C,th)  b1 slab:(1,th)  w2 slab:(th,C)  b2:(1,C)
    # acc:(tm,C) f32, resident across the hidden (j) axis.
    j = pl.program_id(1)

    @pl.when(j == 0)
    def _():
        acc_ref[...] = jnp.zeros_like(acc_ref)

    h = jnp.dot(x_ref[...], w1_ref[...], preferred_element_type=jnp.float32)
    h = _gelu_exact_f32(h + b1_ref[...].astype(jnp.float32))
    acc_ref[...] += jnp.dot(h.astype(w2_ref.dtype), w2_ref[...],
                            preferred_element_type=jnp.float32)

    @pl.when(j == pl.num_programs(1) - 1)
    def _():
        o_ref[...] = (acc_ref[...] + b2_ref[...].astype(jnp.float32)).astype(o_ref.dtype)


# ----------------------------- planning -----------------------------

def _chip_info():
    vmem_cap = 64 * 1024 * 1024       # safe lower bound (v7x per-TC VMEM)
    try:
        vmem_cap = int(pltpu.get_tpu_info().vmem_capacity_bytes)
    except Exception:
        pass
    kind = ""
    try:
        kind = jax.devices()[0].device_kind.lower()
    except Exception:
        pass
    multi_tc = any(t in kind for t in ("v7", "v4", "v5p"))      # 2 TCs share the grid
    mxu = 128 if ("v5e" in kind or "v5 lite" in kind or "v5lite" in kind) else 256
    return multi_tc, mxu, vmem_cap


def _resident_bytes(tm, C, H, x_isz, w_isz, out_isz):
    weights = 2 * H * C * w_isz                      # W1 + W2, single VMEM copy
    biases = (H + C) * w_isz
    io = tm * C * (x_isz + out_isz) * 2              # x/out tiles, double-buffered
    hidden = tm * H * 4                              # f32 matmul-1 / GELU slab
    if w_isz < 4:
        hidden += tm * H * w_isz                     # narrow cast copy feeding matmul-2
    return weights + biases + io + hidden


def _streamed_bytes(tm, th, C, H, x_isz, w_isz, out_isz):
    weights = 2 * th * C * w_isz * 2                 # W1/W2 slabs, double-buffered
    biases = (th + C) * w_isz * 2
    io = tm * C * (x_isz + out_isz) * 2
    acc = tm * C * 4
    hidden = tm * th * 4
    if w_isz < 4:
        hidden += tm * th * w_isz
    return weights + biases + io + acc + hidden


def _choose_tiles(M, C, H, x_isz, w_isz, out_isz, row_tile, multi_tc, mxu, vmem_cap):
    pack = max(8, 32 // max(x_isz, 1))               # sublane pack for the activation dtype
    budget = int(vmem_cap * 0.70)

    base = _round_up(max(int(row_tile), mxu), mxu)   # MXU-aligned full row tile
    if M <= base:
        tm = max(pack, _round_up(M, pack))           # one row step covers everything
    else:
        tm = base

    th = H
    resident = _resident_bytes(tm, C, H, x_isz, w_isz, out_isz) <= budget

    if not resident:
        # Streamed regime: try bigger row tiles first (weight HBM traffic ~ (M/tm)*|W|),
        # then the largest hidden slab th (divisor of H, multiple of 128) that fits.
        th_cands = [d for d in range(H, 127, -128) if H % d == 0] or [H]
        if M <= base:
            tm_cands = [tm]
        else:
            tm_cands = sorted({t for t in (1024, 512, base)
                               if t <= _round_up(M, mxu)} | {base}, reverse=True)
        chosen = None
        for tm_try in tm_cands:
            for th_try in th_cands:
                if th_try == H:
                    continue                          # resident check already failed
                if _streamed_bytes(tm_try, th_try, C, H, x_isz, w_isz, out_isz) <= budget:
                    chosen = (tm_try, th_try)
                    break
            if chosen is not None:
                break
        if chosen is None:
            th_try = th_cands[-1]
            tm_try = tm
            while (_streamed_bytes(tm_try, th_try, C, H, x_isz, w_isz, out_isz) > budget
                   and tm_try > pack):
                tm_try = max(pack, _round_up(tm_try // 2, pack))
            chosen = (tm_try, th_try)
        tm, th = chosen

    # Megacore (v7x): keep the row-step count even so neither core idles a full tile.
    steps = -(-M // tm)
    if multi_tc and steps > 1 and steps % 2 == 1:
        tm_even = max(pack, _round_up(-(-M // (steps + 1)), pack))
        if -(-M // tm_even) % 2 == 0:
            tm = tm_even

    fp = (_resident_bytes(tm, C, H, x_isz, w_isz, out_isz) if resident
          else _streamed_bytes(tm, th, C, H, x_isz, w_isz, out_isz))
    return tm, th, resident, fp


# ----------------------------- wrapper -----------------------------

def mlp_pallas(x, w_fc, b_fc, w_proj, b_proj, *, row_tile=256):
    """GPT MLP forward.

    x     : (B, T, C)
    w_fc  : (H, C)  = c_fc.weight   (PyTorch layout, H = 4*C)
    b_fc  : (H,)    = c_fc.bias
    w_proj: (C, H)  = c_proj.weight (PyTorch layout)
    b_proj: (C,)    = c_proj.bias
    """
    B, T, C = x.shape
    H = w_fc.shape[0]
    assert w_fc.shape == (H, C) and w_proj.shape == (C, H)
    assert b_fc.shape == (H,) and b_proj.shape == (C,)

    M = B * T
    x_isz = jnp.dtype(x.dtype).itemsize
    w_isz = jnp.dtype(w_fc.dtype).itemsize

    multi_tc, mxu, vmem_cap = _chip_info()
    tm, th, resident, footprint = _choose_tiles(
        M, C, H, x_isz, w_isz, x_isz, row_tile, multi_tc, mxu, vmem_cap)

    M_pad = _round_up(M, tm)
    vmem_limit = int(min(max(int(footprint * 1.4), 32 * 1024 * 1024),
                         int(vmem_cap * 0.75)))

    # Operand prep: pad rows to a tile multiple; canonical (K, N) weight layouts so
    # both in-kernel matmuls are plain (M,K)@(K,N) with no in-kernel weight relayout.
    x2d = x.reshape(M, C)
    if M_pad != M:
        x2d = jnp.pad(x2d, ((0, M_pad - M), (0, 0)))
    w1 = w_fc.T                      # (C, H)  one-time transpose outside the kernel
    w2 = w_proj.T                    # (H, C)
    b1 = b_fc.reshape(1, H)
    b2 = b_proj.reshape(1, C)

    if resident:
        # Weights/biases live once in VMEM for the whole grid (no double-buffering).
        vmem_full = pl.BlockSpec(memory_space=pltpu.MemorySpace.VMEM)
        out2d = pl.pallas_call(
            _mlp_kernel_resident,
            out_shape=jax.ShapeDtypeStruct((M_pad, C), x.dtype),
            grid_spec=pltpu.PrefetchScalarGridSpec(
                num_scalar_prefetch=0,
                grid=(M_pad // tm,),
                in_specs=[pl.BlockSpec((tm, C), lambda i: (i, 0)),
                          vmem_full, vmem_full, vmem_full, vmem_full],
                out_specs=pl.BlockSpec((tm, C), lambda i: (i, 0))),
            compiler_params=pltpu.CompilerParams(
                dimension_semantics=("parallel",),
                vmem_limit_bytes=vmem_limit),
        )(x2d, w1, b1, w2, b2)
    else:
        out2d = pl.pallas_call(
            _mlp_kernel_streamed,
            out_shape=jax.ShapeDtypeStruct((M_pad, C), x.dtype),
            grid_spec=pltpu.PrefetchScalarGridSpec(
                num_scalar_prefetch=0,
                grid=(M_pad // tm, H // th),
                in_specs=[pl.BlockSpec((tm, C), lambda i, j: (i, 0)),   # x rows
                          pl.BlockSpec((C, th), lambda i, j: (0, j)),   # c_fc W slab
                          pl.BlockSpec((1, th), lambda i, j: (0, j)),   # c_fc b slab
                          pl.BlockSpec((th, C), lambda i, j: (j, 0)),   # c_proj W slab
                          pl.BlockSpec((1, C), lambda i, j: (0, 0))],   # c_proj b
                out_specs=pl.BlockSpec((tm, C), lambda i, j: (i, 0)),
                scratch_shapes=[pltpu.VMEM((tm, C), jnp.float32)]),
            compiler_params=pltpu.CompilerParams(
                dimension_semantics=("parallel", "arbitrary"),
                vmem_limit_bytes=vmem_limit),
        )(x2d, w1, b1, w2, b2)

    return out2d[:M].reshape(B, T, C)


# ----------------------------- reference & test -----------------------------

def mlp_reference(x, w_fc, b_fc, w_proj, b_proj):
    hp = jax.lax.Precision.HIGHEST
    h = jnp.einsum("btc,hc->bth", x, w_fc, precision=hp) + b_fc
    h = 0.5 * h * (1.0 + jax.lax.erf(h * _INV_SQRT2))
    return jnp.einsum("bth,ch->btc", h, w_proj, precision=hp) + b_proj


if __name__ == "__main__":
    key = jax.random.PRNGKey(0)

    def init_params(k, C):
        H = 4 * C
        k1, k2, k3, k4 = jax.random.split(k, 4)
        bound_fc = 1.0 / math.sqrt(C)
        bound_proj = 1.0 / math.sqrt(H)
        w_fc = jax.random.uniform(k1, (H, C), jnp.float32, -bound_fc, bound_fc)
        b_fc = jax.random.uniform(k2, (H,), jnp.float32, -bound_fc, bound_fc)
        w_proj = jax.random.uniform(k3, (C, H), jnp.float32, -bound_proj, bound_proj)
        b_proj = jax.random.uniform(k4, (C,), jnp.float32, -bound_proj, bound_proj)
        return w_fc, b_fc, w_proj, b_proj

    # Case 1: small GPT-ish block — n_embd=32, hidden=128, M = B*T = 16.
    B, T, C = 2, 8, 32
    kx, kp = jax.random.split(key)
    x = jax.random.normal(kx, (B, T, C), dtype=jnp.float32)
    w_fc, b_fc, w_proj, b_proj = init_params(kp, C)
    out = jax.block_until_ready(mlp_pallas(x, w_fc, b_fc, w_proj, b_proj))
    ref = mlp_reference(x, w_fc, b_fc, w_proj, b_proj)
    assert out.shape == (B, T, C)
    assert jnp.allclose(out, ref, atol=2e-4, rtol=2e-4), "mismatch vs reference (case 1)"

    # Case 2: row count not a multiple of 8 (exercises the row-padding path).
    B2, T2, C2 = 2, 50, 32
    kx2, kp2 = jax.random.split(kp)
    x2 = jax.random.normal(kx2, (B2, T2, C2), dtype=jnp.float32)
    p2 = init_params(kp2, C2)
    out2 = jax.block_until_ready(mlp_pallas(x2, *p2))
    ref2 = mlp_reference(x2, *p2)
    assert out2.shape == (B2, T2, C2)
    assert jnp.allclose(out2, ref2, atol=2e-4, rtol=2e-4), "mismatch vs reference (case 2)"

    # Case 3: lane-dense channels (C=128, H=512) with a full 256-row tile.
    B3, T3, C3 = 4, 64, 128
    kx3, kp3 = jax.random.split(kp2)
    x3 = jax.random.normal(kx3, (B3, T3, C3), dtype=jnp.float32)
    p3 = init_params(kp3, C3)
    out3 = jax.block_until_ready(mlp_pallas(x3, *p3))
    ref3 = mlp_reference(x3, *p3)
    assert out3.shape == (B3, T3, C3)
    assert jnp.allclose(out3, ref3, atol=2e-4, rtol=2e-4), "mismatch vs reference (case 3)"

    print("KERNEL_OK")
</pallas_src>

<mosaic_0001>
module attributes {stable_mosaic.version = 11 : i64} {
  func.func @_mlp_kernel_resident(%arg0: i32, %arg1: memref<16x32xf32, #tpu.memory_space<vmem>>, %arg2: memref<32x128xf32, #tpu.memory_space<vmem>>, %arg3: memref<1x128xf32, #tpu.memory_space<vmem>>, %arg4: memref<128x32xf32, #tpu.memory_space<vmem>>, %arg5: memref<1x32xf32, #tpu.memory_space<vmem>>, %arg6: memref<16x32xf32, #tpu.memory_space<vmem>>) attributes {dimension_semantics = [#tpu.dimension_semantics<parallel>], iteration_bounds = array<i64: 1>, scalar_prefetch = 0 : i64, scratch_operands = 0 : i64, tpu.core_type = #tpu.core_type<tc>, window_params = [{transform_indices = @transform_0, window_bounds = array<i64: 16, 32>}, {pipeline_mode = #tpu.pipeline_mode<synchronous>, transform_indices = @transform_1, window_bounds = array<i64: 32, 128>}, {pipeline_mode = #tpu.pipeline_mode<synchronous>, transform_indices = @transform_2, window_bounds = array<i64: 1, 128>}, {pipeline_mode = #tpu.pipeline_mode<synchronous>, transform_indices = @transform_3, window_bounds = array<i64: 128, 32>}, {pipeline_mode = #tpu.pipeline_mode<synchronous>, transform_indices = @transform_4, window_bounds = array<i64: 1, 32>}, {transform_indices = @transform_5, window_bounds = array<i64: 16, 32>}]} {
    %c0 = arith.constant 0 : index
    %c0_0 = arith.constant 0 : index
    %0 = vector.load %arg1[%c0, %c0_0] : memref<16x32xf32, #tpu.memory_space<vmem>>, vector<16x32xf32>
    %c0_1 = arith.constant 0 : index
    %c0_2 = arith.constant 0 : index
    %1 = vector.load %arg2[%c0_1, %c0_2] : memref<32x128xf32, #tpu.memory_space<vmem>>, vector<32x128xf32>
    %cst = arith.constant dense<0.000000e+00> : vector<16x128xf32>
    %2 = tpu.matmul %0, %1, %cst {dimension_numbers = #tpu.dot_dimension_numbers<[1], [0], [0], [1], [0, 0, 1, 1], [], []>} : vector<16x32xf32>, vector<32x128xf32>, vector<16x128xf32> -> vector<16x128xf32>
    %c0_3 = arith.constant 0 : index
    %c0_4 = arith.constant 0 : index
    %3 = vector.load %arg3[%c0_3, %c0_4] : memref<1x128xf32, #tpu.memory_space<vmem>>, vector<1x128xf32>
    %4 = vector.broadcast %3 : vector<1x128xf32> to vector<16x128xf32>
    %5 = arith.addf %2, %4 : vector<16x128xf32>
    %cst_5 = arith.constant 5.000000e-01 : f32
    %6 = vector.broadcast %cst_5 : f32 to vector<16x128xf32>
    %7 = arith.mulf %6, %5 : vector<16x128xf32>
    %cst_6 = arith.constant 0.707106769 : f32
    %8 = vector.broadcast %cst_6 : f32 to vector<16x128xf32>
    %9 = arith.mulf %5, %8 : vector<16x128xf32>
    %10 = math.erf %9 : vector<16x128xf32>
    %cst_7 = arith.constant 1.000000e+00 : f32
    %11 = vector.broadcast %cst_7 : f32 to vector<16x128xf32>
    %12 = arith.addf %11, %10 : vector<16x128xf32>
    %13 = arith.mulf %7, %12 : vector<16x128xf32>
    %c0_8 = arith.constant 0 : index
    %c0_9 = arith.constant 0 : index
    %14 = vector.load %arg4[%c0_8, %c0_9] : memref<128x32xf32, #tpu.memory_space<vmem>>, vector<128x32xf32>
    %cst_10 = arith.constant dense<0.000000e+00> : vector<16x32xf32>
    %15 = tpu.matmul %13, %14, %cst_10 {dimension_numbers = #tpu.dot_dimension_numbers<[1], [0], [0], [1], [0, 0, 1, 1], [], []>} : vector<16x128xf32>, vector<128x32xf32>, vector<16x32xf32> -> vector<16x32xf32>
    %c0_11 = arith.constant 0 : index
    %c0_12 = arith.constant 0 : index
    %16 = vector.load %arg5[%c0_11, %c0_12] : memref<1x32xf32, #tpu.memory_space<vmem>>, vector<1x32xf32>
    %17 = vector.broadcast %16 : vector<1x32xf32> to vector<16x32xf32>
    %18 = arith.addf %15, %17 : vector<16x32xf32>
    %c0_13 = arith.constant 0 : index
    %c0_14 = arith.constant 0 : index
    %19 = vector.load %arg6[%c0_13, %c0_14] : memref<16x32xf32, #tpu.memory_space<vmem>>, vector<16x32xf32>
    tpu.vector_store %arg6[%c0_13, %c0_14], %18 {strides = array<i32>} : memref<16x32xf32, #tpu.memory_space<vmem>>, vector<16x32xf32>,
    return
  }
  func.func @transform_0(%arg0: i32) -> (i32, i32) {
    %c0_i32 = arith.constant 0 : i32
    %c0_i32_0 = arith.constant 0 : i32
    return %arg0, %c0_i32 : i32, i32
  }
  func.func @transform_1(%arg0: i32) -> (i32, i32) {
    %c0_i32 = arith.constant 0 : i32
    %c0_i32_0 = arith.constant 0 : i32
    %c0_i32_1 = arith.constant 0 : i32
    return %c0_i32, %c0_i32_0 : i32, i32
  }
  func.func @transform_2(%arg0: i32) -> (i32, i32) {
    %c0_i32 = arith.constant 0 : i32
    %c0_i32_0 = arith.constant 0 : i32
    %c0_i32_1 = arith.constant 0 : i32
    return %c0_i32, %c0_i32_0 : i32, i32
  }
  func.func @transform_3(%arg0: i32) -> (i32, i32) {
    %c0_i32 = arith.constant 0 : i32
    %c0_i32_0 = arith.constant 0 : i32
    %c0_i32_1 = arith.constant 0 : i32
    return %c0_i32, %c0_i32_0 : i32, i32
  }
  func.func @transform_4(%arg0: i32) -> (i32, i32) {
    %c0_i32 = arith.constant 0 : i32
    %c0_i32_0 = arith.constant 0 : i32
    %c0_i32_1 = arith.constant 0 : i32
    return %c0_i32, %c0_i32_0 : i32, i32
  }
  func.func @transform_5(%arg0: i32) -> (i32, i32) {
    %c0_i32 = arith.constant 0 : i32
    %c0_i32_0 = arith.constant 0 : i32
    return %arg0, %c0_i32 : i32, i32
  }
}

</mosaic_0001>

<llo_original>
// kernel: tpu_custom_call.1
$region0: #{tpu_custom_call.1}
  #allocation0 [shape = 'u32[]', space=smem, size = 0x4, offset = 0x4, fixed_abs, tag = 'smem constant byte address 0x4 - core index']
  #allocation1 [shape = 'u32[144,128]{1,0:T(1,128)}', space=vmem, size = 0x12000, scoped, tag = 'internal scratch']
  %s0 = inlined_call_operand.vmem [shape: f32[16,32], index: 0, kind: input, shape index: {}]
  %s1 = inlined_call_operand.vmem [shape: f32[32,128], index: 1, kind: input, shape index: {}]
  %s2 = inlined_call_operand.vmem [shape: f32[1,128], index: 2, kind: input, shape index: {}]
  %s3 = inlined_call_operand.vmem [shape: f32[128,32], index: 3, kind: input, shape index: {}]
  %s4 = inlined_call_operand.vmem [shape: f32[1,32], index: 4, kind: input, shape index: {}]
  %s5 = inlined_call_operand.hbm [shape: f32[16,32], index: 5, kind: output, shape index: {}]
  %s6 = sld [smem:[#allocation0]]
  $region30: #{tpu_custom_call.1} parent=0
    _
  %s8 = ssub.s32 1, %s6
  %s9 = scalar_select 0, %s8, %s6
  $region1: #{tpu_custom_call.1} parent=0
    #allocation2 [shape = 'u8[8192]{0}', space=vmem, size = 0x2000, scoped, tag = 'output window, operand 0, single buffered']
    #allocation3 [shape = 's32[1]{0}', space=sflag, size = 0x4, scoped, tag = 'scoped memory for tpu_custom_call.1']
    %10 = vsyncpa [#allocation3], 0
    // Predicated region
    $region2: #{tpu_custom_call.1} parent=1 // pred_check
      _
    $region3: #{tpu_custom_call.1} parent=1 // pred_check_branch
      %12 = sbr.rel (0) target = $region5
    $region4: #{tpu_custom_call.1} parent=1 // pred_region
      _
    $region5: #{tpu_custom_call.1} parent=1 // pred_fallthru
      _
    // Predicated region
    $region6: #{tpu_custom_call.1} parent=1 // pred_check
      _
    $region7: #{tpu_custom_call.1} parent=1 // pred_check_branch
      %14 = sbr.rel (0) target = $region9
    $region8: #{tpu_custom_call.1} parent=1 // pred_region
      _
    $region9: #{tpu_custom_call.1} parent=1 // pred_fallthru
      _
    // Predicated region
    $region10: #{tpu_custom_call.1} parent=1 // pred_check
      _
    $region11: #{tpu_custom_call.1} parent=1 // pred_check_branch
      %16 = sbr.rel (0) target = $region13
    $region12: #{tpu_custom_call.1} parent=1 // pred_region
      _
    $region13: #{tpu_custom_call.1} parent=1 // pred_fallthru
      _
    // Predicated region
    $region14: #{tpu_custom_call.1} parent=1 // pred_check
      _
    $region15: #{tpu_custom_call.1} parent=1 // pred_check_branch
      %18 = sbr.rel (0) target = $region17
    $region16: #{tpu_custom_call.1} parent=1 // pred_region
      _
    $region17: #{tpu_custom_call.1} parent=1 // pred_fallthru
      _
    // Predicated region
    $region18: #{tpu_custom_call.1} parent=1 // pred_check
      _
    $region19: #{tpu_custom_call.1} parent=1 // pred_check_branch
      %20 = sbr.rel (0) target = $region21
    $region20: #{tpu_custom_call.1} parent=1 // pred_region
      _
    $region21: #{tpu_custom_call.1} parent=1 // pred_fallthru
      _
    %v21 = vld [vmem:[%s0] sm:$0xff]
    %v22 = vld [vmem:[%s0 + $0x8] sm:$0xff]
    %v23 = vld [vmem:[%s1] sm:$0xff]
    %v24 = vld [vmem:[%s1 + $0x8] sm:$0xff]
    %v25 = vld [vmem:[%s1 + $0x10] sm:$0xff]
    %v26 = vld [vmem:[%s1 + $0x18] sm:$0xff]
    %v27 = vld [vmem:[%s2] sm:$0x1]
    %v29 = vlaneseq
    %v30 = vshrl.u32 %v29, 7
    %v31 = vsub.s32 0, %v30
    %v32 = vrot.slane %v27, %v31
    %vm34 = vcmask 261120
    %v36 = vsel %vm34, %v21, 0
    %v39 = vsel %vm34, %v22, 0
    %41 = vmatprep.subr.mxu0 0.0
    %42 = vmatpush1.msra.mxu0 0.0
    %43 = vmatprep.subr.mxu0 0.0
    %44 = vmatpush1.msra.mxu0 0.0
    %45 = vmatprep.subr.mxu0 0.0
    %46 = vmatpush1.msra.mxu0 0.0
    %47 = vmatprep.subr.mxu0 0.0
    %48 = vmatpush1.msra.mxu0 0.0
    %49 = vmatprep.subr.mxu0 0.0
    %50 = vmatpush1.msra.mxu0 0.0
    %51 = vmatprep.subr.mxu0 0.0
    %52 = vmatpush1.msra.mxu0 0.0
    %53 = vmatprep.subr.mxu0 0.0
    %54 = vmatpush1.msra.mxu0 0.0
    %55 = vmatprep.subr.mxu0 0.0
    %56 = vmatpush1.msra.mxu0 0.0
    %57 = vmatprep.subr.mxu0 0.0
    %58 = vmatpush1.msra.mxu0 0.0
    %59 = vmatprep.subr.mxu0 0.0
    %60 = vmatpush1.msra.mxu0 0.0
    %61 = vmatprep.subr.mxu0 0.0
    %62 = vmatpush1.msra.mxu0 0.0
    %63 = vmatprep.subr.mxu0 0.0
    %64 = vmatpush1.msra.mxu0 0.0
    %65 = vmatprep.subr.mxu0 0.0
    %66 = vmatpush1.msra.mxu0 %v26
    %67 = vmatprep.subr.mxu0 0.0
    %68 = vmatpush1.msra.mxu0 %v25
    %69 = vmatprep.subr.mxu0 0.0
    %70 = vmatpush1.msra.mxu0 %v24
    %71 = vmatprep.subr.mxu0 0.0
    %72 = vmatpush1.msra.mxu0 %v23
    %73 = vmatprep.subr.mxu0 0.0
    %74 = vmatpush2.msra.mxu0 0.0
    %75 = vmatprep.subr.mxu0 0.0
    %76 = vmatpush2.msra.mxu0 0.0
    %77 = vmatprep.subr.mxu0 0.0
    %78 = vmatpush2.msra.mxu0 0.0
    %79 = vmatprep.subr.mxu0 0.0
    %80 = vmatpush2.msra.mxu0 0.0
    %81 = vmatprep.subr.mxu0 0.0
    %82 = vmatpush2.msra.mxu0 0.0
    %83 = vmatprep.subr.mxu0 0.0
    %84 = vmatpush2.msra.mxu0 0.0
    %85 = vmatprep.subr.mxu0 0.0
    %86 = vmatpush2.msra.mxu0 0.0
    %87 = vmatprep.subr.mxu0 0.0
    %88 = vmatpush2.msra.mxu0 0.0
    %89 = vmatprep.subr.mxu0 0.0
    %90 = vmatpush2.msra.mxu0 0.0
    %91 = vmatprep.subr.mxu0 0.0
    %92 = vmatpush2.msra.mxu0 0.0
    %93 = vmatprep.subr.mxu0 0.0
    %94 = vmatpush2.msra.mxu0 0.0
    %95 = vmatprep.subr.mxu0 0.0
    %96 = vmatpush2.msra.mxu0 0.0
    %97 = vmatprep.subr.mxu0 0.0
    %98 = vmatpush2.msra.mxu0 0.0
    %99 = vmatprep.subr.mxu0 0.0
    %100 = vmatpush2.msra.mxu0 0.0
    %101 = vmatprep.subr.mxu0 0.0
    %102 = vmatpush2.msra.mxu0 0.0
    %103 = vmatprep.subr.mxu0 0.0
    %104 = vmatpush2.msra.mxu0 0.0
    %105 = vmatprep.mubr.f32.mxu0 0.0
    %106 = vmatmul.mubr.f32.gmra.mxu0 %v36
    %v107 = vpop.f32.mrf.mxu0
    %v108 = vadd.f32 %v32, %v107
    %v109 = vpop.f32.mrf.mxu0
    %110 = vmatprep.mubr.f32.mxu0 0.0
    %111 = vmatmul.mubr.f32.gmra.mxu0 %v39
    %v112 = vpop.f32.mrf.mxu0
    %v113 = vadd.f32 %v32, %v112
    %v114 = vpop.f32.mrf.mxu0
    %115 = vdwg.mxu0
    %v116 = vmul.f32 %v108, 0.5
    %v117 = vmul.f32 %v113, 0.5
    %v118 = vmul.f32 %v108, 0.70710677
    %v119 = vmul.f32 %v113, 0.70710677
    %v120 = verf.f32.pop %v118
    %v121 = verf.f32.pop %v119
    %v122 = vadd.f32 %v120, 1.0
    %v123 = vadd.f32 %v121, 1.0
    %v124 = vmul.f32 %v116, %v122
    %v125 = vmul.f32 %v117, %v123
    %v126 = vld [vmem:[%s3] sm:$0xff]
    %v127 = vld [vmem:[%s3 + $0x8] sm:$0xff]
    %v128 = vld [vmem:[%s3 + $0x10] sm:$0xff]
    %v129 = vld [vmem:[%s3 + $0x18] sm:$0xff]
    %v130 = vld [vmem:[%s3 + $0x20] sm:$0xff]
    %v131 = vld [vmem:[%s3 + $0x28] sm:$0xff]
    %v132 = vld [vmem:[%s3 + $0x30] sm:$0xff]
    %v133 = vld [vmem:[%s3 + $0x38] sm:$0xff]
    %v134 = vld [vmem:[%s3 + $0x40] sm:$0xff]
    %v135 = vld [vmem:[%s3 + $0x48] sm:$0xff]
    %v136 = vld [vmem:[%s3 + $0x50] sm:$0xff]
    %v137 = vld [vmem:[%s3 + $0x58] sm:$0xff]
    %v138 = vld [vmem:[%s3 + $0x60] sm:$0xff]
    %v139 = vld [vmem:[%s3 + $0x68] sm:$0xff]
    %v140 = vld [vmem:[%s3 + $0x70] sm:$0xff]
    %v141 = vld [vmem:[%s3 + $0x78] sm:$0xff]
    %v142 = vld [vmem:[%s4] sm:$0x1]
    %v144 = vlaneseq
    %v145 = vshrl.u32 %v144, 7
    %v146 = vsub.s32 0, %v145
    %v147 = vrot.slane %v142, %v146
    %149 = vmatprep.subr.mxu0 0.0
    %150 = vmatpush1.msra.mxu0 %v141
    %151 = vmatprep.subr.mxu0 0.0
    %152 = vmatpush1.msra.mxu0 %v140
    %153 = vmatprep.subr.mxu0 0.0
    %154 = vmatpush1.msra.mxu0 %v139
    %155 = vmatprep.subr.mxu0 0.0
    %156 = vmatpush1.msra.mxu0 %v138
    %157 = vmatprep.subr.mxu0 0.0
    %158 = vmatpush1.msra.mxu0 %v137
    %159 = vmatprep.subr.mxu0 0.0
    %160 = vmatpush1.msra.mxu0 %v136
    %161 = vmatprep.subr.mxu0 0.0
    %162 = vmatpush1.msra.mxu0 %v135
    %163 = vmatprep.subr.mxu0 0.0
    %164 = vmatpush1.msra.mxu0 %v134
    %165 = vmatprep.subr.mxu0 0.0
    %166 = vmatpush1.msra.mxu0 %v133
    %167 = vmatprep.subr.mxu0 0.0
    %168 = vmatpush1.msra.mxu0 %v132
    %169 = vmatprep.subr.mxu0 0.0
    %170 = vmatpush1.msra.mxu0 %v131
    %171 = vmatprep.subr.mxu0 0.0
    %172 = vmatpush1.msra.mxu0 %v130
    %173 = vmatprep.subr.mxu0 0.0
    %174 = vmatpush1.msra.mxu0 %v129
    %175 = vmatprep.subr.mxu0 0.0
    %176 = vmatpush1.msra.mxu0 %v128
    %177 = vmatprep.subr.mxu0 0.0
    %178 = vmatpush1.msra.mxu0 %v127
    %179 = vmatprep.subr.mxu0 0.0
    %180 = vmatpush1.msra.mxu0 %v126
    %181 = vmatprep.subr.mxu0 0.0
    %182 = vmatpush2.msra.mxu0 0.0
    %183 = vmatprep.subr.mxu0 0.0
    %184 = vmatpush2.msra.mxu0 0.0
    %185 = vmatprep.subr.mxu0 0.0
    %186 = vmatpush2.msra.mxu0 0.0
    %187 = vmatprep.subr.mxu0 0.0
    %188 = vmatpush2.msra.mxu0 0.0
    %189 = vmatprep.subr.mxu0 0.0
    %190 = vmatpush2.msra.mxu0 0.0
    %191 = vmatprep.subr.mxu0 0.0
    %192 = vmatpush2.msra.mxu0 0.0
    %193 = vmatprep.subr.mxu0 0.0
    %194 = vmatpush2.msra.mxu0 0.0
    %195 = vmatprep.subr.mxu0 0.0
    %196 = vmatpush2.msra.mxu0 0.0
    %197 = vmatprep.subr.mxu0 0.0
    %198 = vmatpush2.msra.mxu0 0.0
    %199 = vmatprep.subr.mxu0 0.0
    %200 = vmatpush2.msra.mxu0 0.0
    %201 = vmatprep.subr.mxu0 0.0
    %202 = vmatpush2.msra.mxu0 0.0
    %203 = vmatprep.subr.mxu0 0.0
    %204 = vmatpush2.msra.mxu0 0.0
    %205 = vmatprep.subr.mxu0 0.0
    %206 = vmatpush2.msra.mxu0 0.0
    %207 = vmatprep.subr.mxu0 0.0
    %208 = vmatpush2.msra.mxu0 0.0
    %209 = vmatprep.subr.mxu0 0.0
    %210 = vmatpush2.msra.mxu0 0.0
    %211 = vmatprep.subr.mxu0 0.0
    %212 = vmatpush2.msra.mxu0 0.0
    %213 = vmatprep.mubr.f32.mxu0 0.0
    %214 = vmatmul.mubr.f32.gmra.mxu0 %v124
    %v215 = vpop.f32.mrf.mxu0
    %v216 = vadd.f32 %v147, %v215
    %v217 = vpop.f32.mrf.mxu0
    %218 = vmatprep.mubr.f32.mxu0 0.0
    %219 = vmatmul.mubr.f32.gmra.mxu0 %v125
    %v220 = vpop.f32.mrf.mxu0
    %v221 = vadd.f32 %v147, %v220
    %v222 = vpop.f32.mrf.mxu0
    %223 = vdwg.mxu0
    %224 = vst.msk [vmem:[#allocation2] sm:$0xff] %vm34, %v216
    %225 = vst.msk [vmem:[#allocation2 + $0x8] sm:$0xff] %vm34, %v221
    // Predicated region
    $region22: #{tpu_custom_call.1} parent=1 // pred_check
      _
    $region23: #{tpu_custom_call.1} parent=1 // pred_check_branch
      %227 = sbr.rel (0) target = $region25
    $region24: #{tpu_custom_call.1} parent=1 // pred_region
      %s229 = ssub.s32 256, 256
      %230 = vsyncadd [#allocation3], %s229
      %s231 = sshll.u32 [#allocation2], 4
      %s232 = int_to_ptr.vmem [resolvable:$true] %s231
      %237 = dma.vmem_to_hbm [thread:$0]  %s232, 256, %s5, [#allocation3], 128, 128, 8
    $region25: #{tpu_custom_call.1} parent=1 // pred_fallthru
      _
    // Predicated region
    $region26: #{tpu_custom_call.1} parent=1 // pred_check
      _
    $region27: #{tpu_custom_call.1} parent=1 // pred_check_branch
      %239 = sbr.rel (0) target = $region29
    $region28: #{tpu_custom_call.1} parent=1 // pred_region
      %240 = dma.done [#allocation3], 256
    $region29: #{tpu_custom_call.1} parent=1 // pred_fallthru
      _
    %241 = vsyncpa [#allocation3], 1

</llo_original>
